<compile_context>
chip_gen: v7x
topology: tpu7x:2x2x1
jax: 0.10.0
libtpu: 0.0.40
codegen_flags: <defaults>
</compile_context>

<pallas_src>
import jax
import jax.numpy as jnp
from jax.experimental import pallas as pl
from jax.experimental.pallas import tpu as pltpu


# ----------------------------------------------------------------------------
# Kernels
# ----------------------------------------------------------------------------
def _conv_down_kernel(x_ref, h_ref, w_ref, b_ref, o_ref):
    """3x3 / stride-2 / pad-1 conv on one (batch, row-tile) block.

    x_ref : (1, T, 2, Wo+1, 2C)  row-pairs q = tT..tT+T-1 of the padded NHWC
                                 input, viewed as [even-col | odd-col] pairs:
                                 x_ref[0,i,s,p,:] = [xpad[2(tT+i)+s, 2p, :],
                                                     xpad[2(tT+i)+s, 2p+1, :]]
    h_ref : (1, 1, 1, Wo+1, 2C)  halo: even row of pair q = (t+1)*T
                                 (padded row 2*(t+1)*T), needed by kh=2 of the
                                 last output row of the tile.
    w_ref : (6, 2C, C)           per kernel-row r: [2r]   = [[W[r,0]],[W[r,1]]]
                                                   [2r+1] = [[W[r,2]],[0    ]]
    b_ref : (1, C)               bias (f32)
    o_ref : (1, T, Wo, C)        output tile (NHWC)
    """
    _, T, Wo, C = o_ref.shape
    K2 = w_ref.shape[1]                        # 2*C
    M = T * Wo
    acc = jnp.zeros((M, C), jnp.float32)       # small per-tile f32 accumulator

    def tap_row(rows_a, rows_b, r, acc):
        # rows_a[i,j,:] = [xpad[row_r(i), 2j,   :], xpad[row_r(i), 2j+1, :]]
        # rows_b[i,j,:] = [xpad[row_r(i), 2j+2, :], xpad[row_r(i), 2j+3, :]]
        acc = acc + jnp.dot(rows_a.reshape(M, K2), w_ref[2 * r],
                            preferred_element_type=jnp.float32)
        acc = acc + jnp.dot(rows_b.reshape(M, K2), w_ref[2 * r + 1],
                            preferred_element_type=jnp.float32)
        return acc

    # kernel rows kh = 0, 1: padded row 2i+kh lives in pair q=i, parity s=kh.
    for r in range(2):
        rows_a = x_ref[0, :, r, pl.ds(0, Wo), :]            # (T, Wo, 2C)
        rows_b = x_ref[0, :, r, pl.ds(1, Wo), :]
        acc = tap_row(rows_a, rows_b, r, acc)

    # kernel row kh = 2: padded row 2i+2 = parity 0 of pair q=i+1.
    halo_a = h_ref[0, :, 0, pl.ds(0, Wo), :]                # (1, Wo, 2C)
    halo_b = h_ref[0, :, 0, pl.ds(1, Wo), :]
    if T > 1:
        top_a = x_ref[0, pl.ds(1, T - 1), 0, pl.ds(0, Wo), :]
        top_b = x_ref[0, pl.ds(1, T - 1), 0, pl.ds(1, Wo), :]
        rows_a = jnp.concatenate([top_a, halo_a], axis=0)   # (T, Wo, 2C)
        rows_b = jnp.concatenate([top_b, halo_b], axis=0)
    else:
        rows_a, rows_b = halo_a, halo_b
    acc = tap_row(rows_a, rows_b, 2, acc)

    out = acc + b_ref[...]
    o_ref[...] = out.reshape(1, T, Wo, C).astype(o_ref.dtype)


def _avgpool_kernel(x_ref, o_ref):
    """2x2 / stride-2 average pool on one (batch, row-tile) block.

    x_ref : (1, T, 2, Wo, 2C)  x_ref[0,i,s,j,:] = [x[2i+s, 2j, :], x[2i+s, 2j+1, :]]
    o_ref : (1, T, Wo, C)
    """
    C = o_ref.shape[-1]
    x = x_ref[0].astype(jnp.float32)           # (T, 2, Wo, 2C)
    s = x[:, 0] + x[:, 1]                      # row-pair sum     (T, Wo, 2C)
    s = s[:, :, :C] + s[:, :, C:]              # column-pair sum  (T, Wo, C)
    o_ref[0] = (s * 0.25).astype(o_ref.dtype)


# ----------------------------------------------------------------------------
# Wrappers
# ----------------------------------------------------------------------------
def _pick_tile_rows(Ho, Wo, C, itemsize, budget_bytes=6 * 1024 * 1024):
    """Largest row-tile T dividing Ho whose per-step VMEM footprint (inputs and
    outputs are double-buffered by Pallas) fits `budget_bytes` — sized for the
    smallest scoped-VMEM generations (v5e 16 MiB default, v7x 64 MiB physical)."""
    per_row = (2 * 4 * (Wo + 1) * C * itemsize      # 2x double-buffered input pairs
               + Wo * C * (2 * itemsize + 4))       # 2x output + f32 accumulator
    best = 1
    for t in range(1, Ho + 1):
        if Ho % t == 0 and t * per_row <= budget_bytes:
            best = t
    return best


def downsample_conv(x_nchw, weight_hwio, bias, tile_rows=None):
    """Conv2d(C, C, 3, stride=2, padding=1); NCHW in, NCHW out."""
    N, C, H, W = x_nchw.shape
    assert weight_hwio.shape == (3, 3, C, C)          # module has Cin == Cout
    # TODO(synk): odd H/W (PyTorch floor semantics) — current tiling assumes even sizes.
    assert H % 2 == 0 and W % 2 == 0, "even spatial dims required"
    Ho, Wo = H // 2, W // 2
    dtype = x_nchw.dtype

    # Boundary layout conversion (the only real glue pass): NCHW -> NHWC, zero
    # pad folded into the same copy.  The reshape below is a pure row-major
    # bit-reinterpretation (no data movement): it pairs rows (q, s) and columns
    # (p, even|odd) so the kernel picks stride-2 taps with contiguous slices.
    x = jnp.transpose(x_nchw, (0, 2, 3, 1))
    xp = jnp.pad(x, ((0, 0), (1, 1), (1, 1), (0, 0)))
    xv = xp.reshape(N, Ho + 1, 2, Wo + 1, 2 * C)

    # Fold the 3x3 taps into 6 (2C, C) matrices (K = 2C per MXU matmul):
    #   A_r = [[W[r,0]],[W[r,1]]] acts on col-pair p=j ; B_r = [[W[r,2]],[0]] on p=j+1.
    wA = jnp.concatenate([weight_hwio[:, 0], weight_hwio[:, 1]], axis=1)          # (3, 2C, C)
    wB = jnp.concatenate([weight_hwio[:, 2], jnp.zeros_like(weight_hwio[:, 2])], axis=1)
    wcat = jnp.stack([wA, wB], axis=1).reshape(6, 2 * C, C).astype(dtype)         # native dtype
    b = bias.reshape(1, C).astype(jnp.float32)

    T = tile_rows if tile_rows is not None else _pick_tile_rows(Ho, Wo, C, x.dtype.itemsize)
    assert Ho % T == 0, "tile_rows must divide H // 2"
    n_tiles = Ho // T

    out = pl.pallas_call(
        _conv_down_kernel,
        out_shape=jax.ShapeDtypeStruct((N, Ho, Wo, C), dtype),
        grid=(N, n_tiles),
        in_specs=[
            # main row-pair block of this tile
            pl.BlockSpec((1, T, 2, Wo + 1, 2 * C), lambda n, t: (n, t, 0, 0, 0)),
            # 1-row halo (even row of the next pair), same array
            pl.BlockSpec((1, 1, 1, Wo + 1, 2 * C),
                         lambda n, t: (n, (t + 1) * T, 0, 0, 0)),
            pl.BlockSpec((6, 2 * C, C), lambda n, t: (0, 0, 0)),
            pl.BlockSpec((1, C), lambda n, t: (0, 0)),
        ],
        out_specs=pl.BlockSpec((1, T, Wo, C), lambda n, t: (n, t, 0, 0)),
        compiler_params=pltpu.CompilerParams(
            dimension_semantics=("parallel", "parallel"),   # megacore over batch & row tiles
            vmem_limit_bytes=32 * 1024 * 1024,
        ),
    )(xv, xv, wcat, b)
    return jnp.transpose(out, (0, 3, 1, 2))                 # back to NCHW


def downsample_avgpool(x_nchw, tile_rows=None):
    """AvgPool2d(kernel_size=2, stride=2); NCHW in, NCHW out."""
    N, C, H, W = x_nchw.shape
    assert H % 2 == 0 and W % 2 == 0, "even spatial dims required"
    Ho, Wo = H // 2, W // 2
    dtype = x_nchw.dtype

    x = jnp.transpose(x_nchw, (0, 2, 3, 1))                 # boundary pass
    xv = x.reshape(N, Ho, 2, Wo, 2 * C)                     # free reshape

    T = tile_rows if tile_rows is not None else _pick_tile_rows(Ho, Wo, C, x.dtype.itemsize)
    assert Ho % T == 0, "tile_rows must divide H // 2"

    out = pl.pallas_call(
        _avgpool_kernel,
        out_shape=jax.ShapeDtypeStruct((N, Ho, Wo, C), dtype),
        grid=(N, Ho // T),
        in_specs=[pl.BlockSpec((1, T, 2, Wo, 2 * C), lambda n, t: (n, t, 0, 0, 0))],
        out_specs=pl.BlockSpec((1, T, Wo, C), lambda n, t: (n, t, 0, 0)),
        compiler_params=pltpu.CompilerParams(
            dimension_semantics=("parallel", "parallel"),
            vmem_limit_bytes=32 * 1024 * 1024,
        ),
    )(xv)
    return jnp.transpose(out, (0, 3, 1, 2))


class Downsample:
    """JAX/Pallas port of the PyTorch Downsample module (2D)."""

    def __init__(self, channels, use_conv=True, key=None):
        self.channels = channels
        self.use_conv = use_conv
        if use_conv:
            key = jax.random.PRNGKey(42) if key is None else key
            kw_, kb_ = jax.random.split(key)
            fan_in = channels * 3 * 3
            bound = 1.0 / (fan_in ** 0.5)        # PyTorch Conv2d default init range
            # weight stored in HWIO layout: (3, 3, Cin, Cout)
            self.weight = jax.random.uniform(
                kw_, (3, 3, channels, channels), jnp.float32, -bound, bound)
            self.bias = jax.random.uniform(
                kb_, (channels,), jnp.float32, -bound, bound)

    def __call__(self, x_nchw):
        if self.use_conv:
            return downsample_conv(x_nchw, self.weight, self.bias)
        return downsample_avgpool(x_nchw)


if __name__ == "__main__":
    key = jax.random.PRNGKey(0)
    N, C, H, W = 2, 4, 16, 16
    x = jax.random.normal(key, (N, C, H, W), jnp.float32)

    # --- use_conv=True path --------------------------------------------------
    mod = Downsample(C, use_conv=True)
    y = jax.block_until_ready(mod(x))
    assert y.shape == (N, C, H // 2, W // 2)

    w_oihw = jnp.transpose(mod.weight, (3, 2, 0, 1))
    y_ref = jax.lax.conv_general_dilated(
        x, w_oihw, window_strides=(2, 2), padding=((1, 1), (1, 1)),
        dimension_numbers=("NCHW", "OIHW", "NCHW"),
    ) + mod.bias[None, :, None, None]
    assert jnp.allclose(y, y_ref, rtol=1e-4, atol=1e-4), "conv mismatch"

    # multi-row-tile path (exercises the inter-tile halo row)
    y2 = jax.block_until_ready(downsample_conv(x, mod.weight, mod.bias, tile_rows=2))
    assert jnp.allclose(y2, y_ref, rtol=1e-4, atol=1e-4), "tiled conv mismatch"

    # --- use_conv=False path (AvgPool2d(2, 2)) --------------------------------
    mod_pool = Downsample(C, use_conv=False)
    yp = jax.block_until_ready(mod_pool(x))
    yp_ref = x.reshape(N, C, H // 2, 2, W // 2, 2).mean(axis=(3, 5))
    assert jnp.allclose(yp, yp_ref, rtol=1e-5, atol=1e-5), "avgpool mismatch"

    print("KERNEL_OK")
</pallas_src>

<mosaic_0001>
module attributes {stable_mosaic.version = 11 : i64} {
  func.func @_conv_down_kernel(%arg0: i32, %arg1: i32, %arg2: memref<1x8x2x9x8xf32, #tpu.memory_space<vmem>>, %arg3: memref<1x1x1x9x8xf32, #tpu.memory_space<vmem>>, %arg4: memref<6x8x4xf32, #tpu.memory_space<vmem>>, %arg5: memref<1x4xf32, #tpu.memory_space<vmem>>, %arg6: memref<1x8x8x4xf32, #tpu.memory_space<vmem>>) attributes {dimension_semantics = [#tpu.dimension_semantics<parallel>, #tpu.dimension_semantics<parallel>], iteration_bounds = array<i64: 2, 1>, scalar_prefetch = 0 : i64, scratch_operands = 0 : i64, tpu.core_type = #tpu.core_type<tc>, window_params = [{transform_indices = @transform_0, window_bounds = array<i64: 1, 8, 2, 9, 8>}, {transform_indices = @transform_1, window_bounds = array<i64: 1, 1, 1, 9, 8>}, {pipeline_mode = #tpu.pipeline_mode<synchronous>, transform_indices = @transform_2, window_bounds = array<i64: 6, 8, 4>}, {pipeline_mode = #tpu.pipeline_mode<synchronous>, transform_indices = @transform_3, window_bounds = array<i64: 1, 4>}, {transform_indices = @transform_4, window_bounds = array<i64: 1, 8, 8, 4>}]} {
    %cst = arith.constant 0.000000e+00 : f32
    %0 = vector.broadcast %cst : f32 to vector<64x4xf32>
    %c0 = arith.constant 0 : index
    %c0_0 = arith.constant 0 : index
    %c0_1 = arith.constant 0 : index
    %c0_2 = arith.constant 0 : index
    %c0_3 = arith.constant 0 : index
    %1 = vector.load %arg2[%c0, %c0_0, %c0_1, %c0_2, %c0_3] : memref<1x8x2x9x8xf32, #tpu.memory_space<vmem>>, vector<1x8x1x8x8xf32>
    %2 = vector.shape_cast %1 : vector<1x8x1x8x8xf32> to vector<8x8x8xf32>
    %c0_4 = arith.constant 0 : index
    %c0_5 = arith.constant 0 : index
    %c0_6 = arith.constant 0 : index
    %c1 = arith.constant 1 : index
    %c0_7 = arith.constant 0 : index
    %3 = vector.load %arg2[%c0_4, %c0_5, %c0_6, %c1, %c0_7] : memref<1x8x2x9x8xf32, #tpu.memory_space<vmem>>, vector<1x8x1x8x8xf32>
    %4 = vector.shape_cast %3 : vector<1x8x1x8x8xf32> to vector<8x8x8xf32>
    %5 = vector.shape_cast %2 : vector<8x8x8xf32> to vector<64x8xf32>
    %c0_8 = arith.constant 0 : index
    %c0_9 = arith.constant 0 : index
    %c0_10 = arith.constant 0 : index
    %6 = vector.load %arg4[%c0_8, %c0_9, %c0_10] : memref<6x8x4xf32, #tpu.memory_space<vmem>>, vector<1x8x4xf32>
    %7 = vector.shape_cast %6 : vector<1x8x4xf32> to vector<8x4xf32>
    %cst_11 = arith.constant dense<0.000000e+00> : vector<64x4xf32>
    %8 = tpu.matmul %5, %7, %cst_11 {dimension_numbers = #tpu.dot_dimension_numbers<[1], [0], [0], [1], [0, 0, 1, 1], [], []>} : vector<64x8xf32>, vector<8x4xf32>, vector<64x4xf32> -> vector<64x4xf32>
    %9 = arith.addf %0, %8 : vector<64x4xf32>
    %10 = vector.shape_cast %4 : vector<8x8x8xf32> to vector<64x8xf32>
    %c1_12 = arith.constant 1 : index
    %c0_13 = arith.constant 0 : index
    %c0_14 = arith.constant 0 : index
    %11 = vector.load %arg4[%c1_12, %c0_13, %c0_14] : memref<6x8x4xf32, #tpu.memory_space<vmem>>, vector<1x8x4xf32>
    %12 = vector.shape_cast %11 : vector<1x8x4xf32> to vector<8x4xf32>
    %cst_15 = arith.constant dense<0.000000e+00> : vector<64x4xf32>
    %13 = tpu.matmul %10, %12, %cst_15 {dimension_numbers = #tpu.dot_dimension_numbers<[1], [0], [0], [1], [0, 0, 1, 1], [], []>} : vector<64x8xf32>, vector<8x4xf32>, vector<64x4xf32> -> vector<64x4xf32>
    %14 = arith.addf %9, %13 : vector<64x4xf32>
    %c0_16 = arith.constant 0 : index
    %c0_17 = arith.constant 0 : index
    %c1_18 = arith.constant 1 : index
    %c0_19 = arith.constant 0 : index
    %c0_20 = arith.constant 0 : index
    %15 = vector.load %arg2[%c0_16, %c0_17, %c1_18, %c0_19, %c0_20] : memref<1x8x2x9x8xf32, #tpu.memory_space<vmem>>, vector<1x8x1x8x8xf32>
    %16 = vector.shape_cast %15 : vector<1x8x1x8x8xf32> to vector<8x8x8xf32>
    %c0_21 = arith.constant 0 : index
    %c0_22 = arith.constant 0 : index
    %c1_23 = arith.constant 1 : index
    %c1_24 = arith.constant 1 : index
    %c0_25 = arith.constant 0 : index
    %17 = vector.load %arg2[%c0_21, %c0_22, %c1_23, %c1_24, %c0_25] : memref<1x8x2x9x8xf32, #tpu.memory_space<vmem>>, vector<1x8x1x8x8xf32>
    %18 = vector.shape_cast %17 : vector<1x8x1x8x8xf32> to vector<8x8x8xf32>
    %19 = vector.shape_cast %16 : vector<8x8x8xf32> to vector<64x8xf32>
    %c2 = arith.constant 2 : index
    %c0_26 = arith.constant 0 : index
    %c0_27 = arith.constant 0 : index
    %20 = vector.load %arg4[%c2, %c0_26, %c0_27] : memref<6x8x4xf32, #tpu.memory_space<vmem>>, vector<1x8x4xf32>
    %21 = vector.shape_cast %20 : vector<1x8x4xf32> to vector<8x4xf32>
    %cst_28 = arith.constant dense<0.000000e+00> : vector<64x4xf32>
    %22 = tpu.matmul %19, %21, %cst_28 {dimension_numbers = #tpu.dot_dimension_numbers<[1], [0], [0], [1], [0, 0, 1, 1], [], []>} : vector<64x8xf32>, vector<8x4xf32>, vector<64x4xf32> -> vector<64x4xf32>
    %23 = arith.addf %14, %22 : vector<64x4xf32>
    %24 = vector.shape_cast %18 : vector<8x8x8xf32> to vector<64x8xf32>
    %c3 = arith.constant 3 : index
    %c0_29 = arith.constant 0 : index
    %c0_30 = arith.constant 0 : index
    %25 = vector.load %arg4[%c3, %c0_29, %c0_30] : memref<6x8x4xf32, #tpu.memory_space<vmem>>, vector<1x8x4xf32>
    %26 = vector.shape_cast %25 : vector<1x8x4xf32> to vector<8x4xf32>
    %cst_31 = arith.constant dense<0.000000e+00> : vector<64x4xf32>
    %27 = tpu.matmul %24, %26, %cst_31 {dimension_numbers = #tpu.dot_dimension_numbers<[1], [0], [0], [1], [0, 0, 1, 1], [], []>} : vector<64x8xf32>, vector<8x4xf32>, vector<64x4xf32> -> vector<64x4xf32>
    %28 = arith.addf %23, %27 : vector<64x4xf32>
    %c0_32 = arith.constant 0 : index
    %c0_33 = arith.constant 0 : index
    %c0_34 = arith.constant 0 : index
    %c0_35 = arith.constant 0 : index
    %c0_36 = arith.constant 0 : index
    %29 = vector.load %arg3[%c0_32, %c0_33, %c0_34, %c0_35, %c0_36] : memref<1x1x1x9x8xf32, #tpu.memory_space<vmem>>, vector<1x1x1x8x8xf32>
    %30 = vector.shape_cast %29 : vector<1x1x1x8x8xf32> to vector<1x8x8xf32>
    %c0_37 = arith.constant 0 : index
    %c0_38 = arith.constant 0 : index
    %c0_39 = arith.constant 0 : index
    %c1_40 = arith.constant 1 : index
    %c0_41 = arith.constant 0 : index
    %31 = vector.load %arg3[%c0_37, %c0_38, %c0_39, %c1_40, %c0_41] : memref<1x1x1x9x8xf32, #tpu.memory_space<vmem>>, vector<1x1x1x8x8xf32>
    %32 = vector.shape_cast %31 : vector<1x1x1x8x8xf32> to vector<1x8x8xf32>
    %c0_42 = arith.constant 0 : index
    %c1_43 = arith.constant 1 : index
    %c0_44 = arith.constant 0 : index
    %c0_45 = arith.constant 0 : index
    %c0_46 = arith.constant 0 : index
    %33 = vector.load %arg2[%c0_42, %c1_43, %c0_44, %c0_45, %c0_46] : memref<1x8x2x9x8xf32, #tpu.memory_space<vmem>>, vector<1x7x1x8x8xf32>
    %34 = vector.shape_cast %33 : vector<1x7x1x8x8xf32> to vector<7x8x8xf32>
    %c0_47 = arith.constant 0 : index
    %c1_48 = arith.constant 1 : index
    %c0_49 = arith.constant 0 : index
    %c1_50 = arith.constant 1 : index
    %c0_51 = arith.constant 0 : index
    %35 = vector.load %arg2[%c0_47, %c1_48, %c0_49, %c1_50, %c0_51] : memref<1x8x2x9x8xf32, #tpu.memory_space<vmem>>, vector<1x7x1x8x8xf32>
    %36 = vector.shape_cast %35 : vector<1x7x1x8x8xf32> to vector<7x8x8xf32>
    %37 = tpu.concatenate %34, %30 in 0 : vector<7x8x8xf32>, vector<1x8x8xf32> -> vector<8x8x8xf32>
    %38 = tpu.concatenate %36, %32 in 0 : vector<7x8x8xf32>, vector<1x8x8xf32> -> vector<8x8x8xf32>
    %39 = vector.shape_cast %37 : vector<8x8x8xf32> to vector<64x8xf32>
    %c4 = arith.constant 4 : index
    %c0_52 = arith.constant 0 : index
    %c0_53 = arith.constant 0 : index
    %40 = vector.load %arg4[%c4, %c0_52, %c0_53] : memref<6x8x4xf32, #tpu.memory_space<vmem>>, vector<1x8x4xf32>
    %41 = vector.shape_cast %40 : vector<1x8x4xf32> to vector<8x4xf32>
    %cst_54 = arith.constant dense<0.000000e+00> : vector<64x4xf32>
    %42 = tpu.matmul %39, %41, %cst_54 {dimension_numbers = #tpu.dot_dimension_numbers<[1], [0], [0], [1], [0, 0, 1, 1], [], []>} : vector<64x8xf32>, vector<8x4xf32>, vector<64x4xf32> -> vector<64x4xf32>
    %43 = arith.addf %28, %42 : vector<64x4xf32>
    %44 = vector.shape_cast %38 : vector<8x8x8xf32> to vector<64x8xf32>
    %c5 = arith.constant 5 : index
    %c0_55 = arith.constant 0 : index
    %c0_56 = arith.constant 0 : index
    %45 = vector.load %arg4[%c5, %c0_55, %c0_56] : memref<6x8x4xf32, #tpu.memory_space<vmem>>, vector<1x8x4xf32>
    %46 = vector.shape_cast %45 : vector<1x8x4xf32> to vector<8x4xf32>
    %cst_57 = arith.constant dense<0.000000e+00> : vector<64x4xf32>
    %47 = tpu.matmul %44, %46, %cst_57 {dimension_numbers = #tpu.dot_dimension_numbers<[1], [0], [0], [1], [0, 0, 1, 1], [], []>} : vector<64x8xf32>, vector<8x4xf32>, vector<64x4xf32> -> vector<64x4xf32>
    %48 = arith.addf %43, %47 : vector<64x4xf32>
    %c0_58 = arith.constant 0 : index
    %c0_59 = arith.constant 0 : index
    %49 = vector.load %arg5[%c0_58, %c0_59] : memref<1x4xf32, #tpu.memory_space<vmem>>, vector<1x4xf32>
    %50 = vector.broadcast %49 : vector<1x4xf32> to vector<64x4xf32>
    %51 = arith.addf %48, %50 : vector<64x4xf32>
    %52 = vector.shape_cast %51 : vector<64x4xf32> to vector<1x8x8x4xf32>
    %c0_60 = arith.constant 0 : index
    %c0_61 = arith.constant 0 : index
    %c0_62 = arith.constant 0 : index
    %c0_63 = arith.constant 0 : index
    %53 = vector.load %arg6[%c0_60, %c0_61, %c0_62, %c0_63] : memref<1x8x8x4xf32, #tpu.memory_space<vmem>>, vector<1x8x8x4xf32>
    tpu.vector_store %arg6[%c0_60, %c0_61, %c0_62, %c0_63], %52 {strides = array<i32>} : memref<1x8x8x4xf32, #tpu.memory_space<vmem>>, vector<1x8x8x4xf32>,
    return
  }
  func.func @transform_0(%arg0: i32, %arg1: i32) -> (i32, i32, i32, i32, i32) {
    %c0_i32 = arith.constant 0 : i32
    %c0_i32_0 = arith.constant 0 : i32
    %c0_i32_1 = arith.constant 0 : i32
    %c0_i32_2 = arith.constant 0 : i32
    return %arg0, %arg1, %c0_i32, %c0_i32_0, %c0_i32_1 : i32, i32, i32, i32, i32
  }
  func.func @transform_1(%arg0: i32, %arg1: i32) -> (i32, i32, i32, i32, i32) {
    %c1_i32 = arith.constant 1 : i32
    %0 = arith.addi %arg1, %c1_i32 : i32
    %c8_i32 = arith.constant 8 : i32
    %1 = arith.muli %0, %c8_i32 : i32
    %c0_i32 = arith.constant 0 : i32
    %c0_i32_0 = arith.constant 0 : i32
    %c0_i32_1 = arith.constant 0 : i32
    %c0_i32_2 = arith.constant 0 : i32
    return %arg0, %1, %c0_i32, %c0_i32_0, %c0_i32_1 : i32, i32, i32, i32, i32
  }
  func.func @transform_2(%arg0: i32, %arg1: i32) -> (i32, i32, i32) {
    %c0_i32 = arith.constant 0 : i32
    %c0_i32_0 = arith.constant 0 : i32
    %c0_i32_1 = arith.constant 0 : i32
    %c0_i32_2 = arith.constant 0 : i32
    return %c0_i32, %c0_i32_0, %c0_i32_1 : i32, i32, i32
  }
  func.func @transform_3(%arg0: i32, %arg1: i32) -> (i32, i32) {
    %c0_i32 = arith.constant 0 : i32
    %c0_i32_0 = arith.constant 0 : i32
    %c0_i32_1 = arith.constant 0 : i32
    return %c0_i32, %c0_i32_0 : i32, i32
  }
  func.func @transform_4(%arg0: i32, %arg1: i32) -> (i32, i32, i32, i32) {
    %c0_i32 = arith.constant 0 : i32
    %c0_i32_0 = arith.constant 0 : i32
    %c0_i32_1 = arith.constant 0 : i32
    return %arg0, %arg1, %c0_i32, %c0_i32_0 : i32, i32, i32, i32
  }
}

</mosaic_0001>

<llo_original>
// kernel: tpu_custom_call.1
$region0: #{tpu_custom_call.1}
  #allocation0 [shape = 'u32[]', space=smem, size = 0x4, offset = 0x4, fixed_abs, tag = 'smem constant byte address 0x4 - core index']
  #allocation1 [shape = 'u32[144,128]{1,0:T(1,128)}', space=vmem, size = 0x12000, scoped, tag = 'internal scratch']
  %s0 = inlined_call_operand.vmem [shape: f32[2,9,2,9,8], index: 0, kind: input, shape index: {}]
  %s1 = inlined_call_operand.vmem [shape: f32[2,9,2,9,8], index: 1, kind: input, shape index: {}]
  %s2 = inlined_call_operand.vmem [shape: f32[6,8,4], index: 2, kind: input, shape index: {}]
  %s3 = inlined_call_operand.vmem [shape: f32[1,4], index: 3, kind: input, shape index: {}]
  %s4 = inlined_call_operand.vmem [shape: f32[2,8,8,4], index: 4, kind: output, shape index: {}]
  %s5 = sld [smem:[#allocation0]]
  $region49: #{tpu_custom_call.1} parent=0
    _
  %s7 = ssub.s32 1, %s5
  %s8 = scalar_select 0, %s7, %s5
  loop: start=0, step=1, limit=4
  $region2: #{tpu_custom_call.1} parent=0 // loop_pre_header
    _
  $region3: #{tpu_custom_call.1} parent=0 // loop_header
    %s10 = sphi 0, %s14
    %p11 = scmp.ge.s32.totalorder %s10, 4
    %s17 = sphi 0, %s29
    %s18 = sphi 0, %s25
    %s19 = sphi 0, %s17
    %s20 = sphi 0, %s18
    %s21 = sphi 0, %s19
    %s22 = sphi 0, %s20
    %s34 = sphi 0, %s36
    %s37 = sphi 0, %s34
    %s38 = sphi 0, %s37
    %s54 = sphi 0, %s38
    %s66 = sphi 0, %s68
    %s69 = sphi 0, %s66
    %s70 = sphi 0, %s69
    %s86 = sphi 0, %s70
    %s90 = sphi 0, %s90
    %s92 = sphi 0, %s90
    %s93 = sphi 0, %s92
    %s107 = sphi 0, %s93
    %s111 = sphi 0, %s111
    %s113 = sphi 0, %s111
    %s114 = sphi 0, %s113
    %s128 = sphi 0, %s114
    %s136 = sphi 0, %s138
    %s139 = sphi 0, %s136
    %s140 = sphi 0, %s139
    %s156 = sphi 0, %s140
  $region4: #{tpu_custom_call.1} parent=0 // loop_header_branch
    %13 = sbr.rel (%p11) target = $region8
  $region5: #{tpu_custom_call.1} parent=0 // loop_body
    %s15 = ssub.s32 %s10, 1
    %s16 = ssub.s32 %s10, 2
    %s23 = sadd.s32 1, %s18
    %p24 = scmp.ge.s32.totalorder %s23, 1
    %s25 = scalar_select %p24, 0, %s23
    %s26 = sadd.s32 1, %s17
    %s27 = scalar_select %p24, %s26, %s17
    %p28 = scmp.ge.s32.totalorder %s27, 2
    %s29 = scalar_select %p28, 0, %s27
    %s30 = ssub.s32 %s17, %s29
    %s31 = ssub.s32 %s18, %s25
    %s32 = sor.u32 %s30, %s31
    %p33 = scmp.eq.s32.totalorder %s32, 0
    %s35 = sadd.s32 %s34, 1
    %s36 = scalar_select %p33, %s34, %s35
    %p39 = pneg %p33
    %p40 = scmp.eq.s32.totalorder %s10, 1
    %p41 = por %p39, %p40
    %p42 = scmp.ne.s32.totalorder %s34, %s37
    %p43 = scmp.eq.s32.totalorder %s10, 0
    %p44 = por %p42, %p43
    %p45 = scmp.ne.s32.totalorder %s34, %s37
    %p46 = scmp.eq.s32.totalorder %s15, 1
    %p47 = por %p45, %p46
    %p48 = scmp.ne.s32.totalorder %s37, %s38
    %p49 = scmp.eq.s32.totalorder %s15, 0
    %p50 = por %p48, %p49
    %p51 = scmp.ne.s32.totalorder %s37, %s38
    %p52 = scmp.eq.s32.totalorder %s16, 1
    %p53 = por %p51, %p52
    %p55 = scmp.ne.s32.totalorder %s38, %s54
    %p56 = scmp.eq.s32.totalorder %s16, 0
    %p57 = por %p55, %p56
    %s58 = sadd.s32 %s18, 1
    %s59 = smul.u32 %s58, 8
    %s60 = sadd.s32 %s25, 1
    %s61 = smul.u32 %s60, 8
    %s62 = ssub.s32 %s17, %s29
    %s63 = ssub.s32 %s59, %s61
    %s64 = sor.u32 %s62, %s63
    %p65 = scmp.eq.s32.totalorder %s64, 0
    %s67 = sadd.s32 %s66, 1
    %s68 = scalar_select %p65, %s66, %s67
    %p71 = pneg %p65
    %p72 = scmp.eq.s32.totalorder %s10, 1
    %p73 = por %p71, %p72
    %p74 = scmp.ne.s32.totalorder %s66, %s69
    %p75 = scmp.eq.s32.totalorder %s10, 0
    %p76 = por %p74, %p75
    %p77 = scmp.ne.s32.totalorder %s66, %s69
    %p78 = scmp.eq.s32.totalorder %s15, 1
    %p79 = por %p77, %p78
    %p80 = scmp.ne.s32.totalorder %s69, %s70
    %p81 = scmp.eq.s32.totalorder %s15, 0
    %p82 = por %p80, %p81
    %p83 = scmp.ne.s32.totalorder %s69, %s70
    %p84 = scmp.eq.s32.totalorder %s16, 1
    %p85 = por %p83, %p84
    %p87 = scmp.ne.s32.totalorder %s70, %s86
    %p88 = scmp.eq.s32.totalorder %s16, 0
    %p89 = por %p87, %p88
    %s91 = sadd.s32 %s90, 1
    %p94 = scmp.eq.s32.totalorder %s10, 1
    %p95 = scmp.ne.s32.totalorder %s90, %s92
    %p96 = scmp.eq.s32.totalorder %s10, 0
    %p97 = por %p95, %p96
    %p98 = scmp.ne.s32.totalorder %s90, %s92
    %p99 = scmp.eq.s32.totalorder %s15, 1
    %p100 = por %p98, %p99
    %p101 = scmp.ne.s32.totalorder %s92, %s93
    %p102 = scmp.eq.s32.totalorder %s15, 0
    %p103 = por %p101, %p102
    %p104 = scmp.ne.s32.totalorder %s92, %s93
    %p105 = scmp.eq.s32.totalorder %s16, 1
    %p106 = por %p104, %p105
    %p108 = scmp.ne.s32.totalorder %s93, %s107
    %p109 = scmp.eq.s32.totalorder %s16, 0
    %p110 = por %p108, %p109
    %s112 = sadd.s32 %s111, 1
    %p115 = scmp.eq.s32.totalorder %s10, 1
    %p116 = scmp.ne.s32.totalorder %s111, %s113
    %p117 = scmp.eq.s32.totalorder %s10, 0
    %p118 = por %p116, %p117
    %p119 = scmp.ne.s32.totalorder %s111, %s113
    %p120 = scmp.eq.s32.totalorder %s15, 1
    %p121 = por %p119, %p120
    %p122 = scmp.ne.s32.totalorder %s113, %s114
    %p123 = scmp.eq.s32.totalorder %s15, 0
    %p124 = por %p122, %p123
    %p125 = scmp.ne.s32.totalorder %s113, %s114
    %p126 = scmp.eq.s32.totalorder %s16, 1
    %p127 = por %p125, %p126
    %p129 = scmp.ne.s32.totalorder %s114, %s128
    %p130 = scmp.eq.s32.totalorder %s16, 0
    %p131 = por %p129, %p130
    %s132 = ssub.s32 %s17, %s29
    %s133 = ssub.s32 %s18, %s25
    %s134 = sor.u32 %s132, %s133
    %p135 = scmp.eq.s32.totalorder %s134, 0
    %s137 = sadd.s32 %s136, 1
    %s138 = scalar_select %p135, %s136, %s137
    %p141 = pneg %p135
    %p142 = scmp.eq.s32.totalorder %s10, 1
    %p143 = por %p141, %p142
    %p144 = scmp.ne.s32.totalorder %s136, %s139
    %p145 = scmp.eq.s32.totalorder %s10, 0
    %p146 = por %p144, %p145
    %p147 = scmp.ne.s32.totalorder %s136, %s139
    %p148 = scmp.eq.s32.totalorder %s15, 1
    %p149 = por %p147, %p148
    %p150 = scmp.ne.s32.totalorder %s139, %s140
    %p151 = scmp.eq.s32.totalorder %s15, 0
    %p152 = por %p150, %p151
    %p153 = scmp.ne.s32.totalorder %s139, %s140
    %p154 = scmp.eq.s32.totalorder %s16, 1
    %p155 = por %p153, %p154
    %p157 = scmp.ne.s32.totalorder %s140, %s156
    %p158 = scmp.eq.s32.totalorder %s16, 0
    %p159 = por %p157, %p158
    %p160 = scmp.le.s32.totalorder 1, %s10
    %p161 = scmp.lt.s32.totalorder %s10, 3
    %p162 = pnand %p160, %p161
    %p163 = pneg %p162
    // Predicated region
    $region9: #{tpu_custom_call.1} parent=5 // pred_check
      _
    $region10: #{tpu_custom_call.1} parent=5 // pred_check_branch
      %165 = sbr.rel (%p162) target = $region12
    $region11: #{tpu_custom_call.1} parent=5 // pred_region
      %s166 = ssub.s32 %s10, 1
      // Predicated region
      $region13: #{tpu_custom_call.1} parent=11 // pred_check
        %p167 = pneg %p103
      $region14: #{tpu_custom_call.1} parent=11 // pred_check_branch
        %169 = sbr.rel (%p167) target = $region16
      $region15: #{tpu_custom_call.1} parent=11 // pred_region
        _
      $region16: #{tpu_custom_call.1} parent=11 // pred_fallthru
        _
      // Predicated region
      $region17: #{tpu_custom_call.1} parent=11 // pred_check
        %p170 = pneg %p124
      $region18: #{tpu_custom_call.1} parent=11 // pred_check_branch
        %172 = sbr.rel (%p170) target = $region20
      $region19: #{tpu_custom_call.1} parent=11 // pred_region
        _
      $region20: #{tpu_custom_call.1} parent=11 // pred_fallthru
        _
    $region12: #{tpu_custom_call.1} parent=5 // pred_fallthru
      _
    %p173 = scmp.lt.s32.totalorder %s10, 2
    // Predicated region
    $region21: #{tpu_custom_call.1} parent=5 // pred_check
      %p174 = pneg %p173
    $region22: #{tpu_custom_call.1} parent=5 // pred_check_branch
      %176 = sbr.rel (%p174) target = $region24
    $region23: #{tpu_custom_call.1} parent=5 // pred_region
      // Predicated region
      $region25: #{tpu_custom_call.1} parent=23 // pred_check
        %p177 = pneg %p44
      $region26: #{tpu_custom_call.1} parent=23 // pred_check_branch
        %179 = sbr.rel (%p177) target = $region28
      $region27: #{tpu_custom_call.1} parent=23 // pred_region
        %s180 = smul.u32 8, %s18
        %s181 = ssub.s32 9, %s180
        %p182 = scmp.lt.s32.totalorder %s181, 8
        %s183 = scalar_select %p182, %s181, 8
        %s184 = smul.u32 128, %s183
        %s185 = smul.u32 %s184, 2
        %s186 = smul.u32 %s185, 2
        %p187 = scmp.lt.s32.totalorder %s17, 1
        %s188 = scalar_select %p187, %s17, 1
        %p189 = scmp.lt.s32.totalorder %s180, 8
        %s190 = scalar_select %p189, %s180, 8
        %s191 = smul.addr %s190, 4
        %s192 = smul.addr %s188, 36
        %s193 = sadd.s32 %s191, %s192
        %s194 = smul.addr %s193, 8
        %s195 = scalar_lea.vmem %s0, %s194
        %s196 = smul.u32 8, %s18
        %s197 = ssub.s32 9, %s196
        %p198 = scmp.lt.s32.totalorder %s197, 8
        %s199 = scalar_select %p198, %s197, 8
        %s200 = smul.u32 128, %s199
        %s201 = smul.u32 %s200, 2
        %s202 = smul.u32 %s201, 2
      $region28: #{tpu_custom_call.1} parent=23 // pred_fallthru
        _
      // Predicated region
      $region29: #{tpu_custom_call.1} parent=23 // pred_check
        %p203 = pneg %p76
      $region30: #{tpu_custom_call.1} parent=23 // pred_check_branch
        %205 = sbr.rel (%p203) target = $region32
      $region31: #{tpu_custom_call.1} parent=23 // pred_region
        %s206 = sadd.s32 %s18, 1
        %s207 = smul.u32 %s206, 8
        %p208 = scmp.lt.s32.totalorder %s17, 1
        %s209 = scalar_select %p208, %s17, 1
        %p210 = scmp.lt.s32.totalorder %s207, 8
        %s211 = scalar_select %p210, %s207, 8
        %s212 = smul.addr %s211, 4
        %s213 = smul.addr %s209, 36
        %s214 = sadd.s32 %s212, %s213
        %s215 = smul.addr %s214, 8
        %s216 = scalar_lea.vmem %s1, %s215
        %s217 = sadd.s32 %s18, 1
        %s218 = smul.u32 %s217, 8
      $region32: #{tpu_custom_call.1} parent=23 // pred_fallthru
        _
    $region24: #{tpu_custom_call.1} parent=5 // pred_fallthru
      _
    %p219 = scmp.le.s32.totalorder 1, %s10
    %p220 = scmp.lt.s32.totalorder %s10, 3
    %p221 = pnand %p219, %p220
    %p222 = pneg %p221
    // Predicated region
    $region33: #{tpu_custom_call.1} parent=5 // pred_check
      _
    $region34: #{tpu_custom_call.1} parent=5 // pred_check_branch
      %224 = sbr.rel (%p221) target = $region36
    $region35: #{tpu_custom_call.1} parent=5 // pred_region
      %s225 = ssub.s32 %s10, 1
      %s226 = smul.u32 8, %s20
      %s227 = ssub.s32 9, %s226
      %p228 = scmp.lt.s32.totalorder %s227, 8
      %s229 = scalar_select %p228, %s227, 8
      %s230 = smul.u32 128, %s229
      %s231 = smul.u32 %s230, 2
      %s232 = smul.u32 %s231, 2
      %p233 = scmp.lt.s32.totalorder %s19, 1
      %s234 = scalar_select %p233, %s19, 1
      %p235 = scmp.lt.s32.totalorder %s226, 8
      %s236 = scalar_select %p235, %s226, 8
      %s237 = smul.addr %s236, 4
      %s238 = smul.addr %s234, 36
      %s239 = sadd.s32 %s237, %s238
      %s240 = smul.addr %s239, 8
      %s241 = scalar_lea.vmem %s0, %s240
      %p242 = pneg %p50
      %p243 = pneg %p47
      %s244 = sadd.s32 %s20, 1
      %s245 = smul.u32 %s244, 8
      %p246 = scmp.lt.s32.totalorder %s19, 1
      %s247 = scalar_select %p246, %s19, 1
      %p248 = scmp.lt.s32.totalorder %s245, 8
      %s249 = scalar_select %p248, %s245, 8
      %s250 = smul.addr %s249, 4
      %s251 = smul.addr %s247, 36
      %s252 = sadd.s32 %s250, %s251
      %s253 = smul.addr %s252, 8
      %s254 = scalar_lea.vmem %s1, %s253
      %p255 = pneg %p82
      %p256 = pneg %p79
      %p257 = pneg %p103
      %p258 = pneg %p100
      %p259 = pneg %p124
      %p260 = pneg %p121
      %p261 = pneg %p152
      %p262 = pneg %p149
      %s263 = smul.u32 8, %s20
      %p264 = scmp.lt.s32.totalorder %s19, 1
      %s265 = scalar_select %p264, %s19, 1
      %p266 = scmp.lt.s32.totalorder %s263, 7
      %s267 = scalar_select %p266, %s263, 7
      %s268 = smul.addr %s265, 8
      %s269 = sadd.s32 %s267, %s268
      %s270 = smul.addr %s269, 8
      %s271 = scalar_lea.vmem %s4, %s270
      %s272 = smul.u32 8, %s20
      %s273 = ssub.s32 9, %s272
      %p274 = scmp.lt.s32.totalorder %s273, 8
      %s275 = scalar_select %p274, %s273, 8
      %s276 = smul.u32 128, %s275
      %s277 = smul.u32 %s276, 2
      %s278 = smul.u32 %s277, 2
      %p279 = scmp.lt.s32.totalorder %s19, 1
      %s280 = scalar_select %p279, %s19, 1
      %p281 = scmp.lt.s32.totalorder %s272, 8
      %s282 = scalar_select %p281, %s272, 8
      %s283 = smul.addr %s282, 4
      %s284 = smul.addr %s280, 36
      %s285 = sadd.s32 %s283, %s284
      %s286 = smul.addr %s285, 8
      %s287 = scalar_lea.vmem %s0, %s286
      %s288 = smul.u32 8, %s20
      %s289 = ssub.s32 9, %s288
      %p290 = scmp.lt.s32.totalorder %s289, 8
      %s291 = scalar_select %p290, %s289, 8
      %s292 = smul.u32 128, %s291
      %s293 = smul.u32 %s292, 2
      %s294 = smul.u32 %s293, 2
      %s295 = sadd.s32 %s20, 1
      %s296 = smul.u32 %s295, 8
      %p297 = scmp.lt.s32.totalorder %s19, 1
      %s298 = scalar_select %p297, %s19, 1
      %p299 = scmp.lt.s32.totalorder %s296, 8
      %s300 = scalar_select %p299, %s296, 8
      %s301 = smul.addr %s300, 4
      %s302 = smul.addr %s298, 36
      %s303 = sadd.s32 %s301, %s302
      %s304 = smul.addr %s303, 8
      %s305 = scalar_lea.vmem %s1, %s304
      %s306 = sadd.s32 %s20, 1
      %s307 = smul.u32 %s306, 8
      %s308 = smul.u32 8, %s20
      %p309 = scmp.lt.s32.totalorder %s19, 1
      %s310 = scalar_select %p309, %s19, 1
      %p311 = scmp.lt.s32.totalorder %s308, 7
      %s312 = scalar_select %p311, %s308, 7
      %s313 = smul.addr %s310, 8
      %s314 = sadd.s32 %s312, %s313
      %s315 = smul.addr %s314, 8
      %s316 = scalar_lea.vmem %s4, %s315
      %s317 = smul.u32 8, %s20
      %v318 = vld [vmem:[%s287] sm:$0xff]
      %v319 = vld [vmem:[%s287 + $0x20] sm:$0xff]
      %v320 = vld [vmem:[%s287 + $0x40] sm:$0xff]
      %v321 = vld [vmem:[%s287 + $0x60] sm:$0xff]
      %v322 = vld [vmem:[%s287 + $0x80] sm:$0xff]
      %v323 = vld [vmem:[%s287 + $0xa0] sm:$0xff]
      %v324 = vld [vmem:[%s287 + $0xc0] sm:$0xff]
      %v325 = vld [vmem:[%s287 + $0xe0] sm:$0xff]
      %v326 = vld [vmem:[%s287 + $0x1] sm:$0xff]
      %v327 = vld [vmem:[%s287 + $0x21] sm:$0xff]
      %v328 = vld [vmem:[%s287 + $0x41] sm:$0xff]
      %v329 = vld [vmem:[%s287 + $0x61] sm:$0xff]
      %v330 = vld [vmem:[%s287 + $0x81] sm:$0xff]
      %v331 = vld [vmem:[%s287 + $0xa1] sm:$0xff]
      %v332 = vld [vmem:[%s287 + $0xc1] sm:$0xff]
      %v333 = vld [vmem:[%s287 + $0xe1] sm:$0xff]
      %v334 = vld [vmem:[%s2] sm:$0xff]
      %s335 = scalar_lea.vmem %s2, 8
      %v336 = vld [vmem:[%s335] sm:$0xff]
      %vm337 = vcmask 64512
      %v339 = vsel %vm337, %v326, 0
      %v342 = vsel %vm337, %v327, 0
      %v345 = vsel %vm337, %v328, 0
      %v348 = vsel %vm337, %v329, 0
      %v351 = vsel %vm337, %v330, 0
      %v354 = vsel %vm337, %v331, 0
      %v357 = vsel %vm337, %v332, 0
      %v360 = vsel %vm337, %v333, 0
      %362 = vmatprep.subr.mxu0 0.0
      %363 = vmatpush1.msra.mxu0 %v336
      %364 = vmatprep.subr.mxu0 0.0
      %365 = vmatpush1.msra.mxu0 0.0
      %366 = vmatprep.subr.mxu0 0.0
      %367 = vmatpush1.msra.mxu0 0.0
      %368 = vmatprep.subr.mxu0 0.0
      %369 = vmatpush1.msra.mxu0 0.0
      %370 = vmatprep.subr.mxu0 0.0
      %371 = vmatpush1.msra.mxu0 0.0
      %372 = vmatprep.subr.mxu0 0.0
      %373 = vmatpush1.msra.mxu0 0.0
      %374 = vmatprep.subr.mxu0 0.0
      %375 = vmatpush1.msra.mxu0 0.0
      %376 = vmatprep.subr.mxu0 0.0
      %377 = vmatpush1.msra.mxu0 0.0
      %378 = vmatprep.subr.mxu0 0.0
      %379 = vmatpush1.msra.mxu0 0.0
      %380 = vmatprep.subr.mxu0 0.0
      %381 = vmatpush1.msra.mxu0 0.0
      %382 = vmatprep.subr.mxu0 0.0
      %383 = vmatpush1.msra.mxu0 0.0
      %384 = vmatprep.subr.mxu0 0.0
      %385 = vmatpush1.msra.mxu0 0.0
      %386 = vmatprep.subr.mxu0 0.0
      %387 = vmatpush1.msra.mxu0 0.0
      %388 = vmatprep.subr.mxu0 0.0
      %389 = vmatpush1.msra.mxu0 0.0
      %390 = vmatprep.subr.mxu0 0.0
      %391 = vmatpush1.msra.mxu0 0.0
      %392 = vmatprep.subr.mxu0 0.0
      %393 = vmatpush1.msra.mxu0 0.0
      %394 = vmatprep.subr.mxu0 0.0
      %395 = vmatpush1.msra.mxu0 0.0
      %396 = vmatprep.subr.mxu0 0.0
      %397 = vmatpush1.msra.mxu0 0.0
      %398 = vmatprep.subr.mxu0 0.0
      %399 = vmatpush1.msra.mxu0 0.0
      %400 = vmatprep.subr.mxu0 0.0
      %401 = vmatpush1.msra.mxu0 0.0
      %402 = vmatprep.subr.mxu0 0.0
      %403 = vmatpush1.msra.mxu0 0.0
      %404 = vmatprep.subr.mxu0 0.0
      %405 = vmatpush1.msra.mxu0 0.0
      %406 = vmatprep.subr.mxu0 0.0
      %407 = vmatpush1.msra.mxu0 0.0
      %408 = vmatprep.subr.mxu0 0.0
      %409 = vmatpush1.msra.mxu0 0.0
      %410 = vmatprep.subr.mxu0 0.0
      %411 = vmatpush1.msra.mxu0 0.0
      %412 = vmatprep.subr.mxu0 0.0
      %413 = vmatpush1.msra.mxu0 0.0
      %414 = vmatprep.subr.mxu0 0.0
      %415 = vmatpush1.msra.mxu0 0.0
      %416 = vmatprep.subr.mxu0 0.0
      %417 = vmatpush1.msra.mxu0 0.0
      %418 = vmatprep.subr.mxu0 0.0
      %419 = vmatpush1.msra.mxu0 0.0
      %420 = vmatprep.subr.mxu0 0.0
      %421 = vmatpush1.msra.mxu0 0.0
      %422 = vmatprep.subr.mxu0 0.0
      %423 = vmatpush1.msra.mxu0 0.0
      %424 = vmatprep.subr.mxu0 0.0
      %425 = vmatpush1.msra.mxu0 0.0
      %426 = vmatprep.mubr.f32.mxu0 0.0
      %427 = vmatmul.mubr.f32.gmra.mrb[0].mxu0 %v339
      %v428 = vpop.f32.mrb[0].mxu0
      %v429 = vadd.f32 0.0, %v428
      %v430 = vpop.f32.mrb[0].mxu0
      %431 = vmatprep.mubr.f32.mxu0 0.0
      %432 = vmatmul.mubr.f32.gmra.mrb[0].mxu0 %v342
      %v433 = vpop.f32.mrb[0].mxu0
      %v434 = vadd.f32 0.0, %v433
      %v435 = vpop.f32.mrb[0].mxu0
      %436 = vmatprep.mubr.f32.mxu0 0.0
      %437 = vmatmul.mubr.f32.gmra.mrb[0].mxu0 %v345
      %v438 = vpop.f32.mrb[0].mxu0
      %v439 = vadd.f32 0.0, %v438
      %v440 = vpop.f32.mrb[0].mxu0
      %441 = vmatprep.mubr.f32.mxu0 0.0
      %442 = vmatmul.mubr.f32.gmra.mrb[0].mxu0 %v348
      %v443 = vpop.f32.mrb[0].mxu0
      %v444 = vadd.f32 0.0, %v443
      %v445 = vpop.f32.mrb[0].mxu0
      %446 = vmatprep.mubr.f32.mxu0 0.0
      %447 = vmatmul.mubr.f32.gmra.mrb[0].mxu0 %v351
      %v448 = vpop.f32.mrb[0].mxu0
      %v449 = vadd.f32 0.0, %v448
      %v450 = vpop.f32.mrb[0].mxu0
      %451 = vmatprep.mubr.f32.mxu0 0.0
      %452 = vmatmul.mubr.f32.gmra.mrb[0].mxu0 %v354
      %v453 = vpop.f32.mrb[0].mxu0
      %v454 = vadd.f32 0.0, %v453
      %v455 = vpop.f32.mrb[0].mxu0
      %456 = vmatprep.mubr.f32.mxu0 0.0
      %457 = vmatmul.mubr.f32.gmra.mrb[0].mxu0 %v357
      %v458 = vpop.f32.mrb[0].mxu0
      %v459 = vadd.f32 0.0, %v458
      %v460 = vpop.f32.mrb[0].mxu0
      %461 = vmatprep.mubr.f32.mxu0 0.0
      %462 = vmatmul.mubr.f32.gmra.mrb[0].mxu0 %v360
      %v463 = vpop.f32.mrb[0].mxu0
      %v464 = vadd.f32 0.0, %v463
      %v465 = vpop.f32.mrb[0].mxu0
      %466 = vdwg.mxu0
      %v468 = vsel %vm337, %v318, 0
      %v471 = vsel %vm337, %v319, 0
      %v474 = vsel %vm337, %v320, 0
      %v477 = vsel %vm337, %v321, 0
      %v480 = vsel %vm337, %v322, 0
      %v483 = vsel %vm337, %v323, 0
      %v486 = vsel %vm337, %v324, 0
      %v489 = vsel %vm337, %v325, 0
      %491 = vmatprep.subr.mxu0 0.0
      %492 = vmatpush1.msra.mxu0 %v334
      %493 = vmatprep.subr.mxu0 0.0
      %494 = vmatpush1.msra.mxu0 0.0
      %495 = vmatprep.subr.mxu0 0.0
      %496 = vmatpush1.msra.mxu0 0.0
      %497 = vmatprep.subr.mxu0 0.0
      %498 = vmatpush1.msra.mxu0 0.0
      %499 = vmatprep.subr.mxu0 0.0
      %500 = vmatpush1.msra.mxu0 0.0
      %501 = vmatprep.subr.mxu0 0.0
      %502 = vmatpush1.msra.mxu0 0.0
      %503 = vmatprep.subr.mxu0 0.0
      %504 = vmatpush1.msra.mxu0 0.0
      %505 = vmatprep.subr.mxu0 0.0
      %506 = vmatpush1.msra.mxu0 0.0
      %507 = vmatprep.subr.mxu0 0.0
      %508 = vmatpush1.msra.mxu0 0.0
      %509 = vmatprep.subr.mxu0 0.0
      %510 = vmatpush1.msra.mxu0 0.0
      %511 = vmatprep.subr.mxu0 0.0
      %512 = vmatpush1.msra.mxu0 0.0
      %513 = vmatprep.subr.mxu0 0.0
      %514 = vmatpush1.msra.mxu0 0.0
      %515 = vmatprep.subr.mxu0 0.0
      %516 = vmatpush1.msra.mxu0 0.0
      %517 = vmatprep.subr.mxu0 0.0
      %518 = vmatpush1.msra.mxu0 0.0
      %519 = vmatprep.subr.mxu0 0.0
      %520 = vmatpush1.msra.mxu0 0.0
      %521 = vmatprep.subr.mxu0 0.0
      %522 = vmatpush1.msra.mxu0 0.0
      %523 = vmatprep.subr.mxu0 0.0
      %524 = vmatpush1.msra.mxu0 0.0
      %525 = vmatprep.subr.mxu0 0.0
      %526 = vmatpush1.msra.mxu0 0.0
      %527 = vmatprep.subr.mxu0 0.0
      %528 = vmatpush1.msra.mxu0 0.0
      %529 = vmatprep.subr.mxu0 0.0
      %530 = vmatpush1.msra.mxu0 0.0
      %531 = vmatprep.subr.mxu0 0.0
      %532 = vmatpush1.msra.mxu0 0.0
      %533 = vmatprep.subr.mxu0 0.0
      %534 = vmatpush1.msra.mxu0 0.0
      %535 = vmatprep.subr.mxu0 0.0
      %536 = vmatpush1.msra.mxu0 0.0
      %537 = vmatprep.subr.mxu0 0.0
      %538 = vmatpush1.msra.mxu0 0.0
      %539 = vmatprep.subr.mxu0 0.0
      %540 = vmatpush1.msra.mxu0 0.0
      %541 = vmatprep.subr.mxu0 0.0
      %542 = vmatpush1.msra.mxu0 0.0
      %543 = vmatprep.subr.mxu0 0.0
      %544 = vmatpush1.msra.mxu0 0.0
      %545 = vmatprep.subr.mxu0 0.0
      %546 = vmatpush1.msra.mxu0 0.0
      %547 = vmatprep.subr.mxu0 0.0
      %548 = vmatpush1.msra.mxu0 0.0
      %549 = vmatprep.subr.mxu0 0.0
      %550 = vmatpush1.msra.mxu0 0.0
      %551 = vmatprep.subr.mxu0 0.0
      %552 = vmatpush1.msra.mxu0 0.0
      %553 = vmatprep.subr.mxu0 0.0
      %554 = vmatpush1.msra.mxu0 0.0
      %555 = vmatprep.mubr.f32.mxu0 0.0
      %556 = vmatmul.mubr.f32.gmra.mrb[0].mxu0 %v468
      %v557 = vpop.f32.mrb[0].mxu0
      %v558 = vadd.f32 %v429, %v557
      %v559 = vpop.f32.mrb[0].mxu0
      %560 = vmatprep.mubr.f32.mxu0 0.0
      %561 = vmatmul.mubr.f32.gmra.mrb[0].mxu0 %v471
      %v562 = vpop.f32.mrb[0].mxu0
      %v563 = vadd.f32 %v434, %v562
      %v564 = vpop.f32.mrb[0].mxu0
      %565 = vmatprep.mubr.f32.mxu0 0.0
      %566 = vmatmul.mubr.f32.gmra.mrb[0].mxu0 %v474
      %v567 = vpop.f32.mrb[0].mxu0
      %v568 = vadd.f32 %v439, %v567
      %v569 = vpop.f32.mrb[0].mxu0
      %570 = vmatprep.mubr.f32.mxu0 0.0
      %571 = vmatmul.mubr.f32.gmra.mrb[0].mxu0 %v477
      %v572 = vpop.f32.mrb[0].mxu0
      %v573 = vadd.f32 %v444, %v572
      %v574 = vpop.f32.mrb[0].mxu0
      %575 = vmatprep.mubr.f32.mxu0 0.0
      %576 = vmatmul.mubr.f32.gmra.mrb[0].mxu0 %v480
      %v577 = vpop.f32.mrb[0].mxu0
      %v578 = vadd.f32 %v449, %v577
      %v579 = vpop.f32.mrb[0].mxu0
      %580 = vmatprep.mubr.f32.mxu0 0.0
      %581 = vmatmul.mubr.f32.gmra.mrb[0].mxu0 %v483
      %v582 = vpop.f32.mrb[0].mxu0
      %v583 = vadd.f32 %v454, %v582
      %v584 = vpop.f32.mrb[0].mxu0
      %585 = vmatprep.mubr.f32.mxu0 0.0
      %586 = vmatmul.mubr.f32.gmra.mrb[0].mxu0 %v486
      %v587 = vpop.f32.mrb[0].mxu0
      %v588 = vadd.f32 %v459, %v587
      %v589 = vpop.f32.mrb[0].mxu0
      %590 = vmatprep.mubr.f32.mxu0 0.0
      %591 = vmatmul.mubr.f32.gmra.mrb[0].mxu0 %v489
      %v592 = vpop.f32.mrb[0].mxu0
      %v593 = vadd.f32 %v464, %v592
      %v594 = vpop.f32.mrb[0].mxu0
      %595 = vdwg.mxu0
      %s596 = scalar_lea.vmem %s287, 16
      %v597 = vld [vmem:[%s596] sm:$0xff]
      %v598 = vld [vmem:[%s596 + $0x20] sm:$0xff]
      %v599 = vld [vmem:[%s596 + $0x40] sm:$0xff]
      %v600 = vld [vmem:[%s596 + $0x60] sm:$0xff]
      %v601 = vld [vmem:[%s596 + $0x80] sm:$0xff]
      %v602 = vld [vmem:[%s596 + $0xa0] sm:$0xff]
      %v603 = vld [vmem:[%s596 + $0xc0] sm:$0xff]
      %v604 = vld [vmem:[%s596 + $0xe0] sm:$0xff]
      %v605 = vld [vmem:[%s596 + $0x1] sm:$0xff]
      %v606 = vld [vmem:[%s596 + $0x21] sm:$0xff]
      %v607 = vld [vmem:[%s596 + $0x41] sm:$0xff]
      %v608 = vld [vmem:[%s596 + $0x61] sm:$0xff]
      %v609 = vld [vmem:[%s596 + $0x81] sm:$0xff]
      %v610 = vld [vmem:[%s596 + $0xa1] sm:$0xff]
      %v611 = vld [vmem:[%s596 + $0xc1] sm:$0xff]
      %v612 = vld [vmem:[%s596 + $0xe1] sm:$0xff]
      %s613 = scalar_lea.vmem %s2, 16
      %v614 = vld [vmem:[%s613] sm:$0xff]
      %v616 = vsel %vm337, %v597, 0
      %v619 = vsel %vm337, %v598, 0
      %v622 = vsel %vm337, %v599, 0
      %v625 = vsel %vm337, %v600, 0
      %v628 = vsel %vm337, %v601, 0
      %v631 = vsel %vm337, %v602, 0
      %v634 = vsel %vm337, %v603, 0
      %v637 = vsel %vm337, %v604, 0
      %639 = vmatprep.subr.mxu0 0.0
      %640 = vmatpush1.msra.mxu0 %v614
      %641 = vmatprep.subr.mxu0 0.0
      %642 = vmatpush1.msra.mxu0 0.0
      %643 = vmatprep.subr.mxu0 0.0
      %644 = vmatpush1.msra.mxu0 0.0
      %645 = vmatprep.subr.mxu0 0.0
      %646 = vmatpush1.msra.mxu0 0.0
      %647 = vmatprep.subr.mxu0 0.0
      %648 = vmatpush1.msra.mxu0 0.0
      %649 = vmatprep.subr.mxu0 0.0
      %650 = vmatpush1.msra.mxu0 0.0
      %651 = vmatprep.subr.mxu0 0.0
      %652 = vmatpush1.msra.mxu0 0.0
      %653 = vmatprep.subr.mxu0 0.0
      %654 = vmatpush1.msra.mxu0 0.0
      %655 = vmatprep.subr.mxu0 0.0
      %656 = vmatpush1.msra.mxu0 0.0
      %657 = vmatprep.subr.mxu0 0.0
      %658 = vmatpush1.msra.mxu0 0.0
      %659 = vmatprep.subr.mxu0 0.0
      %660 = vmatpush1.msra.mxu0 0.0
      %661 = vmatprep.subr.mxu0 0.0
      %662 = vmatpush1.msra.mxu0 0.0
      %663 = vmatprep.subr.mxu0 0.0
      %664 = vmatpush1.msra.mxu0 0.0
      %665 = vmatprep.subr.mxu0 0.0
      %666 = vmatpush1.msra.mxu0 0.0
      %667 = vmatprep.subr.mxu0 0.0
      %668 = vmatpush1.msra.mxu0 0.0
      %669 = vmatprep.subr.mxu0 0.0
      %670 = vmatpush1.msra.mxu0 0.0
      %671 = vmatprep.subr.mxu0 0.0
      %672 = vmatpush1.msra.mxu0 0.0
      %673 = vmatprep.subr.mxu0 0.0
      %674 = vmatpush1.msra.mxu0 0.0
      %675 = vmatprep.subr.mxu0 0.0
      %676 = vmatpush1.msra.mxu0 0.0
      %677 = vmatprep.subr.mxu0 0.0
      %678 = vmatpush1.msra.mxu0 0.0
      %679 = vmatprep.subr.mxu0 0.0
      %680 = vmatpush1.msra.mxu0 0.0
      %681 = vmatprep.subr.mxu0 0.0
      %682 = vmatpush1.msra.mxu0 0.0
      %683 = vmatprep.subr.mxu0 0.0
      %684 = vmatpush1.msra.mxu0 0.0
      %685 = vmatprep.subr.mxu0 0.0
      %686 = vmatpush1.msra.mxu0 0.0
      %687 = vmatprep.subr.mxu0 0.0
      %688 = vmatpush1.msra.mxu0 0.0
      %689 = vmatprep.subr.mxu0 0.0
      %690 = vmatpush1.msra.mxu0 0.0
      %691 = vmatprep.subr.mxu0 0.0
      %692 = vmatpush1.msra.mxu0 0.0
      %693 = vmatprep.subr.mxu0 0.0
      %694 = vmatpush1.msra.mxu0 0.0
      %695 = vmatprep.subr.mxu0 0.0
      %696 = vmatpush1.msra.mxu0 0.0
      %697 = vmatprep.subr.mxu0 0.0
      %698 = vmatpush1.msra.mxu0 0.0
      %699 = vmatprep.subr.mxu0 0.0
      %700 = vmatpush1.msra.mxu0 0.0
      %701 = vmatprep.subr.mxu0 0.0
      %702 = vmatpush1.msra.mxu0 0.0
      %703 = vmatprep.mubr.f32.mxu0 0.0
      %704 = vmatmul.mubr.f32.gmra.mrb[0].mxu0 %v616
      %v705 = vpop.f32.mrb[0].mxu0
      %v706 = vadd.f32 0.0, %v705
      %v707 = vpop.f32.mrb[0].mxu0
      %708 = vmatprep.mubr.f32.mxu0 0.0
      %709 = vmatmul.mubr.f32.gmra.mrb[0].mxu0 %v619
      %v710 = vpop.f32.mrb[0].mxu0
      %v711 = vadd.f32 0.0, %v710
      %v712 = vpop.f32.mrb[0].mxu0
      %713 = vmatprep.mubr.f32.mxu0 0.0
      %714 = vmatmul.mubr.f32.gmra.mrb[0].mxu0 %v622
      %v715 = vpop.f32.mrb[0].mxu0
      %v716 = vadd.f32 0.0, %v715
      %v717 = vpop.f32.mrb[0].mxu0
      %718 = vmatprep.mubr.f32.mxu0 0.0
      %719 = vmatmul.mubr.f32.gmra.mrb[0].mxu0 %v625
      %v720 = vpop.f32.mrb[0].mxu0
      %v721 = vadd.f32 0.0, %v720
      %v722 = vpop.f32.mrb[0].mxu0
      %723 = vmatprep.mubr.f32.mxu0 0.0
      %724 = vmatmul.mubr.f32.gmra.mrb[0].mxu0 %v628
      %v725 = vpop.f32.mrb[0].mxu0
      %v726 = vadd.f32 0.0, %v725
      %v727 = vpop.f32.mrb[0].mxu0
      %728 = vmatprep.mubr.f32.mxu0 0.0
      %729 = vmatmul.mubr.f32.gmra.mrb[0].mxu0 %v631
      %v730 = vpop.f32.mrb[0].mxu0
      %v731 = vadd.f32 0.0, %v730
      %v732 = vpop.f32.mrb[0].mxu0
      %733 = vmatprep.mubr.f32.mxu0 0.0
      %734 = vmatmul.mubr.f32.gmra.mrb[0].mxu0 %v634
      %v735 = vpop.f32.mrb[0].mxu0
      %v736 = vadd.f32 0.0, %v735
      %v737 = vpop.f32.mrb[0].mxu0
      %738 = vmatprep.mubr.f32.mxu0 0.0
      %739 = vmatmul.mubr.f32.gmra.mrb[0].mxu0 %v637
      %v740 = vpop.f32.mrb[0].mxu0
      %v741 = vadd.f32 0.0, %v740
      %v742 = vpop.f32.mrb[0].mxu0
      %743 = vdwg.mxu0
      %v744 = vadd.f32 %v558, %v706
      %v745 = vadd.f32 %v563, %v711
      %v746 = vadd.f32 %v568, %v716
      %v747 = vadd.f32 %v573, %v721
      %v748 = vadd.f32 %v578, %v726
      %v749 = vadd.f32 %v583, %v731
      %v750 = vadd.f32 %v588, %v736
      %v751 = vadd.f32 %v593, %v741
      %s752 = scalar_lea.vmem %s2, 24
      %v753 = vld [vmem:[%s752] sm:$0xff]
      %v755 = vsel %vm337, %v605, 0
      %v758 = vsel %vm337, %v606, 0
      %v761 = vsel %vm337, %v607, 0
      %v764 = vsel %vm337, %v608, 0
      %v767 = vsel %vm337, %v609, 0
      %v770 = vsel %vm337, %v610, 0
      %v773 = vsel %vm337, %v611, 0
      %v776 = vsel %vm337, %v612, 0
      %778 = vmatprep.subr.mxu0 0.0
      %779 = vmatpush1.msra.mxu0 %v753
      %780 = vmatprep.subr.mxu0 0.0
      %781 = vmatpush1.msra.mxu0 0.0
      %782 = vmatprep.subr.mxu0 0.0
      %783 = vmatpush1.msra.mxu0 0.0
      %784 = vmatprep.subr.mxu0 0.0
      %785 = vmatpush1.msra.mxu0 0.0
      %786 = vmatprep.subr.mxu0 0.0
      %787 = vmatpush1.msra.mxu0 0.0
      %788 = vmatprep.subr.mxu0 0.0
      %789 = vmatpush1.msra.mxu0 0.0
      %790 = vmatprep.subr.mxu0 0.0
      %791 = vmatpush1.msra.mxu0 0.0
      %792 = vmatprep.subr.mxu0 0.0
      %793 = vmatpush1.msra.mxu0 0.0
      %794 = vmatprep.subr.mxu0 0.0
      %795 = vmatpush1.msra.mxu0 0.0
      %796 = vmatprep.subr.mxu0 0.0
      %797 = vmatpush1.msra.mxu0 0.0
      %798 = vmatprep.subr.mxu0 0.0
      %799 = vmatpush1.msra.mxu0 0.0
      %800 = vmatprep.subr.mxu0 0.0
      %801 = vmatpush1.msra.mxu0 0.0
      %802 = vmatprep.subr.mxu0 0.0
      %803 = vmatpush1.msra.mxu0 0.0
      %804 = vmatprep.subr.mxu0 0.0
      %805 = vmatpush1.msra.mxu0 0.0
      %806 = vmatprep.subr.mxu0 0.0
      %807 = vmatpush1.msra.mxu0 0.0
      %808 = vmatprep.subr.mxu0 0.0
      %809 = vmatpush1.msra.mxu0 0.0
      %810 = vmatprep.subr.mxu0 0.0
      %811 = vmatpush1.msra.mxu0 0.0
      %812 = vmatprep.subr.mxu0 0.0
      %813 = vmatpush1.msra.mxu0 0.0
      %814 = vmatprep.subr.mxu0 0.0
      %815 = vmatpush1.msra.mxu0 0.0
      %816 = vmatprep.subr.mxu0 0.0
      %817 = vmatpush1.msra.mxu0 0.0
      %818 = vmatprep.subr.mxu0 0.0
      %819 = vmatpush1.msra.mxu0 0.0
      %820 = vmatprep.subr.mxu0 0.0
      %821 = vmatpush1.msra.mxu0 0.0
      %822 = vmatprep.subr.mxu0 0.0
      %823 = vmatpush1.msra.mxu0 0.0
      %824 = vmatprep.subr.mxu0 0.0
      %825 = vmatpush1.msra.mxu0 0.0
      %826 = vmatprep.subr.mxu0 0.0
      %827 = vmatpush1.msra.mxu0 0.0
      %828 = vmatprep.subr.mxu0 0.0
      %829 = vmatpush1.msra.mxu0 0.0
      %830 = vmatprep.subr.mxu0 0.0
      %831 = vmatpush1.msra.mxu0 0.0
      %832 = vmatprep.subr.mxu0 0.0
      %833 = vmatpush1.msra.mxu0 0.0
      %834 = vmatprep.subr.mxu0 0.0
      %835 = vmatpush1.msra.mxu0 0.0
      %836 = vmatprep.subr.mxu0 0.0
      %837 = vmatpush1.msra.mxu0 0.0
      %838 = vmatprep.subr.mxu0 0.0
      %839 = vmatpush1.msra.mxu0 0.0
      %840 = vmatprep.subr.mxu0 0.0
      %841 = vmatpush1.msra.mxu0 0.0
      %842 = vmatprep.mubr.f32.mxu0 0.0
      %843 = vmatmul.mubr.f32.gmra.mrb[0].mxu0 %v755
      %v844 = vpop.f32.mrb[0].mxu0
      %v845 = vadd.f32 0.0, %v844
      %v846 = vpop.f32.mrb[0].mxu0
      %847 = vmatprep.mubr.f32.mxu0 0.0
      %848 = vmatmul.mubr.f32.gmra.mrb[0].mxu0 %v758
      %v849 = vpop.f32.mrb[0].mxu0
      %v850 = vadd.f32 0.0, %v849
      %v851 = vpop.f32.mrb[0].mxu0
      %852 = vmatprep.mubr.f32.mxu0 0.0
      %853 = vmatmul.mubr.f32.gmra.mrb[0].mxu0 %v761
      %v854 = vpop.f32.mrb[0].mxu0
      %v855 = vadd.f32 0.0, %v854
      %v856 = vpop.f32.mrb[0].mxu0
      %857 = vmatprep.mubr.f32.mxu0 0.0
      %858 = vmatmul.mubr.f32.gmra.mrb[0].mxu0 %v764
      %v859 = vpop.f32.mrb[0].mxu0
      %v860 = vadd.f32 0.0, %v859
      %v861 = vpop.f32.mrb[0].mxu0
      %862 = vmatprep.mubr.f32.mxu0 0.0
      %863 = vmatmul.mubr.f32.gmra.mrb[0].mxu0 %v767
      %v864 = vpop.f32.mrb[0].mxu0
      %v865 = vadd.f32 0.0, %v864
      %v866 = vpop.f32.mrb[0].mxu0
      %867 = vmatprep.mubr.f32.mxu0 0.0
      %868 = vmatmul.mubr.f32.gmra.mrb[0].mxu0 %v770
      %v869 = vpop.f32.mrb[0].mxu0
      %v870 = vadd.f32 0.0, %v869
      %v871 = vpop.f32.mrb[0].mxu0
      %872 = vmatprep.mubr.f32.mxu0 0.0
      %873 = vmatmul.mubr.f32.gmra.mrb[0].mxu0 %v773
      %v874 = vpop.f32.mrb[0].mxu0
      %v875 = vadd.f32 0.0, %v874
      %v876 = vpop.f32.mrb[0].mxu0
      %877 = vmatprep.mubr.f32.mxu0 0.0
      %878 = vmatmul.mubr.f32.gmra.mrb[0].mxu0 %v776
      %v879 = vpop.f32.mrb[0].mxu0
      %v880 = vadd.f32 0.0, %v879
      %v881 = vpop.f32.mrb[0].mxu0
      %882 = vdwg.mxu0
      %v883 = vadd.f32 %v744, %v845
      %v884 = vadd.f32 %v745, %v850
      %v885 = vadd.f32 %v746, %v855
      %v886 = vadd.f32 %v747, %v860
      %v887 = vadd.f32 %v748, %v865
      %v888 = vadd.f32 %v749, %v870
      %v889 = vadd.f32 %v750, %v875
      %v890 = vadd.f32 %v751, %v880
      %v891 = vld [vmem:[%s305] sm:$0xff]
      %v892 = vld [vmem:[%s305 + $0x1] sm:$0xff]
      %s893 = scalar_lea.vmem %s287, 32
      %v894 = vld [vmem:[%s893] sm:$0xff]
      %v895 = vld [vmem:[%s893 + $0x20] sm:$0xff]
      %v896 = vld [vmem:[%s893 + $0x40] sm:$0xff]
      %v897 = vld [vmem:[%s893 + $0x60] sm:$0xff]
      %v898 = vld [vmem:[%s893 + $0x80] sm:$0xff]
      %v899 = vld [vmem:[%s893 + $0xa0] sm:$0xff]
      %v900 = vld [vmem:[%s893 + $0xc0] sm:$0xff]
      %v901 = vld [vmem:[%s893 + $0x1] sm:$0xff]
      %v902 = vld [vmem:[%s893 + $0x21] sm:$0xff]
      %v903 = vld [vmem:[%s893 + $0x41] sm:$0xff]
      %v904 = vld [vmem:[%s893 + $0x61] sm:$0xff]
      %v905 = vld [vmem:[%s893 + $0x81] sm:$0xff]
      %v906 = vld [vmem:[%s893 + $0xa1] sm:$0xff]
      %v907 = vld [vmem:[%s893 + $0xc1] sm:$0xff]
      %s908 = scalar_lea.vmem %s2, 32
      %v909 = vld [vmem:[%s908] sm:$0xff]
      %v911 = vsel %vm337, %v894, 0
      %v914 = vsel %vm337, %v895, 0
      %v917 = vsel %vm337, %v896, 0
      %v920 = vsel %vm337, %v897, 0
      %v923 = vsel %vm337, %v898, 0
      %v926 = vsel %vm337, %v899, 0
      %v929 = vsel %vm337, %v900, 0
      %v932 = vsel %vm337, %v891, 0
      %934 = vmatprep.subr.mxu0 0.0
      %935 = vmatpush1.msra.mxu0 %v909
      %936 = vmatprep.subr.mxu0 0.0
      %937 = vmatpush1.msra.mxu0 0.0
      %938 = vmatprep.subr.mxu0 0.0
      %939 = vmatpush1.msra.mxu0 0.0
      %940 = vmatprep.subr.mxu0 0.0
      %941 = vmatpush1.msra.mxu0 0.0
      %942 = vmatprep.subr.mxu0 0.0
      %943 = vmatpush1.msra.mxu0 0.0
      %944 = vmatprep.subr.mxu0 0.0
      %945 = vmatpush1.msra.mxu0 0.0
      %946 = vmatprep.subr.mxu0 0.0
      %947 = vmatpush1.msra.mxu0 0.0
      %948 = vmatprep.subr.mxu0 0.0
      %949 = vmatpush1.msra.mxu0 0.0
      %950 = vmatprep.subr.mxu0 0.0
      %951 = vmatpush1.msra.mxu0 0.0
      %952 = vmatprep.subr.mxu0 0.0
      %953 = vmatpush1.msra.mxu0 0.0
      %954 = vmatprep.subr.mxu0 0.0
      %955 = vmatpush1.msra.mxu0 0.0
      %956 = vmatprep.subr.mxu0 0.0
      %957 = vmatpush1.msra.mxu0 0.0
      %958 = vmatprep.subr.mxu0 0.0
      %959 = vmatpush1.msra.mxu0 0.0
      %960 = vmatprep.subr.mxu0 0.0
      %961 = vmatpush1.msra.mxu0 0.0
      %962 = vmatprep.subr.mxu0 0.0
      %963 = vmatpush1.msra.mxu0 0.0
      %964 = vmatprep.subr.mxu0 0.0
      %965 = vmatpush1.msra.mxu0 0.0
      %966 = vmatprep.subr.mxu0 0.0
      %967 = vmatpush1.msra.mxu0 0.0
      %968 = vmatprep.subr.mxu0 0.0
      %969 = vmatpush1.msra.mxu0 0.0
      %970 = vmatprep.subr.mxu0 0.0
      %971 = vmatpush1.msra.mxu0 0.0
      %972 = vmatprep.subr.mxu0 0.0
      %973 = vmatpush1.msra.mxu0 0.0
      %974 = vmatprep.subr.mxu0 0.0
      %975 = vmatpush1.msra.mxu0 0.0
      %976 = vmatprep.subr.mxu0 0.0
      %977 = vmatpush1.msra.mxu0 0.0
      %978 = vmatprep.subr.mxu0 0.0
      %979 = vmatpush1.msra.mxu0 0.0
      %980 = vmatprep.subr.mxu0 0.0
      %981 = vmatpush1.msra.mxu0 0.0
      %982 = vmatprep.subr.mxu0 0.0
      %983 = vmatpush1.msra.mxu0 0.0
      %984 = vmatprep.subr.mxu0 0.0
      %985 = vmatpush1.msra.mxu0 0.0
      %986 = vmatprep.subr.mxu0 0.0
      %987 = vmatpush1.msra.mxu0 0.0
      %988 = vmatprep.subr.mxu0 0.0
      %989 = vmatpush1.msra.mxu0 0.0
      %990 = vmatprep.subr.mxu0 0.0
      %991 = vmatpush1.msra.mxu0 0.0
      %992 = vmatprep.subr.mxu0 0.0
      %993 = vmatpush1.msra.mxu0 0.0
      %994 = vmatprep.subr.mxu0 0.0
      %995 = vmatpush1.msra.mxu0 0.0
      %996 = vmatprep.subr.mxu0 0.0
      %997 = vmatpush1.msra.mxu0 0.0
      %998 = vmatprep.mubr.f32.mxu0 0.0
      %999 = vmatmul.mubr.f32.gmra.mrb[0].mxu0 %v911
      %v1000 = vpop.f32.mrb[0].mxu0
      %v1001 = vadd.f32 0.0, %v1000
      %v1002 = vpop.f32.mrb[0].mxu0
      %1003 = vmatprep.mubr.f32.mxu0 0.0
      %1004 = vmatmul.mubr.f32.gmra.mrb[0].mxu0 %v914
      %v1005 = vpop.f32.mrb[0].mxu0
      %v1006 = vadd.f32 0.0, %v1005
      %v1007 = vpop.f32.mrb[0].mxu0
      %1008 = vmatprep.mubr.f32.mxu0 0.0
      %1009 = vmatmul.mubr.f32.gmra.mrb[0].mxu0 %v917
      %v1010 = vpop.f32.mrb[0].mxu0
      %v1011 = vadd.f32 0.0, %v1010
      %v1012 = vpop.f32.mrb[0].mxu0
      %1013 = vmatprep.mubr.f32.mxu0 0.0
      %1014 = vmatmul.mubr.f32.gmra.mrb[0].mxu0 %v920
      %v1015 = vpop.f32.mrb[0].mxu0
      %v1016 = vadd.f32 0.0, %v1015
      %v1017 = vpop.f32.mrb[0].mxu0
      %1018 = vmatprep.mubr.f32.mxu0 0.0
      %1019 = vmatmul.mubr.f32.gmra.mrb[0].mxu0 %v923
      %v1020 = vpop.f32.mrb[0].mxu0
      %v1021 = vadd.f32 0.0, %v1020
      %v1022 = vpop.f32.mrb[0].mxu0
      %1023 = vmatprep.mubr.f32.mxu0 0.0
      %1024 = vmatmul.mubr.f32.gmra.mrb[0].mxu0 %v926
      %v1025 = vpop.f32.mrb[0].mxu0
      %v1026 = vadd.f32 0.0, %v1025
      %v1027 = vpop.f32.mrb[0].mxu0
      %1028 = vmatprep.mubr.f32.mxu0 0.0
      %1029 = vmatmul.mubr.f32.gmra.mrb[0].mxu0 %v929
      %v1030 = vpop.f32.mrb[0].mxu0
      %v1031 = vadd.f32 0.0, %v1030
      %v1032 = vpop.f32.mrb[0].mxu0
      %1033 = vmatprep.mubr.f32.mxu0 0.0
      %1034 = vmatmul.mubr.f32.gmra.mrb[0].mxu0 %v932
      %v1035 = vpop.f32.mrb[0].mxu0
      %v1036 = vadd.f32 0.0, %v1035
      %v1037 = vpop.f32.mrb[0].mxu0
      %1038 = vdwg.mxu0
      %v1039 = vadd.f32 %v883, %v1001
      %v1040 = vadd.f32 %v884, %v1006
      %v1041 = vadd.f32 %v885, %v1011
      %v1042 = vadd.f32 %v886, %v1016
      %v1043 = vadd.f32 %v887, %v1021
      %v1044 = vadd.f32 %v888, %v1026
      %v1045 = vadd.f32 %v889, %v1031
      %v1046 = vadd.f32 %v890, %v1036
      %s1047 = scalar_lea.vmem %s2, 40
      %v1048 = vld [vmem:[%s1047] sm:$0xff]
      %v1050 = vsel %vm337, %v901, 0
      %v1053 = vsel %vm337, %v902, 0
      %v1056 = vsel %vm337, %v903, 0
      %v1059 = vsel %vm337, %v904, 0
      %v1062 = vsel %vm337, %v905, 0
      %v1065 = vsel %vm337, %v906, 0
      %v1068 = vsel %vm337, %v907, 0
      %v1071 = vsel %vm337, %v892, 0
      %1073 = vmatprep.subr.mxu0 0.0
      %1074 = vmatpush1.msra.mxu0 %v1048
      %1075 = vmatprep.subr.mxu0 0.0
      %1076 = vmatpush1.msra.mxu0 0.0
      %1077 = vmatprep.subr.mxu0 0.0
      %1078 = vmatpush1.msra.mxu0 0.0
      %1079 = vmatprep.subr.mxu0 0.0
      %1080 = vmatpush1.msra.mxu0 0.0
      %1081 = vmatprep.subr.mxu0 0.0
      %1082 = vmatpush1.msra.mxu0 0.0
      %1083 = vmatprep.subr.mxu0 0.0
      %1084 = vmatpush1.msra.mxu0 0.0
      %1085 = vmatprep.subr.mxu0 0.0
      %1086 = vmatpush1.msra.mxu0 0.0
      %1087 = vmatprep.subr.mxu0 0.0
      %1088 = vmatpush1.msra.mxu0 0.0
      %1089 = vmatprep.subr.mxu0 0.0
      %1090 = vmatpush1.msra.mxu0 0.0
      %1091 = vmatprep.subr.mxu0 0.0
      %1092 = vmatpush1.msra.mxu0 0.0
      %1093 = vmatprep.subr.mxu0 0.0
      %1094 = vmatpush1.msra.mxu0 0.0
      %1095 = vmatprep.subr.mxu0 0.0
      %1096 = vmatpush1.msra.mxu0 0.0
      %1097 = vmatprep.subr.mxu0 0.0
      %1098 = vmatpush1.msra.mxu0 0.0
      %1099 = vmatprep.subr.mxu0 0.0
      %1100 = vmatpush1.msra.mxu0 0.0
      %1101 = vmatprep.subr.mxu0 0.0
      %1102 = vmatpush1.msra.mxu0 0.0
      %1103 = vmatprep.subr.mxu0 0.0
      %1104 = vmatpush1.msra.mxu0 0.0
      %1105 = vmatprep.subr.mxu0 0.0
      %1106 = vmatpush1.msra.mxu0 0.0
      %1107 = vmatprep.subr.mxu0 0.0
      %1108 = vmatpush1.msra.mxu0 0.0
      %1109 = vmatprep.subr.mxu0 0.0
      %1110 = vmatpush1.msra.mxu0 0.0
      %1111 = vmatprep.subr.mxu0 0.0
      %1112 = vmatpush1.msra.mxu0 0.0
      %1113 = vmatprep.subr.mxu0 0.0
      %1114 = vmatpush1.msra.mxu0 0.0
      %1115 = vmatprep.subr.mxu0 0.0
      %1116 = vmatpush1.msra.mxu0 0.0
      %1117 = vmatprep.subr.mxu0 0.0
      %1118 = vmatpush1.msra.mxu0 0.0
      %1119 = vmatprep.subr.mxu0 0.0
      %1120 = vmatpush1.msra.mxu0 0.0
      %1121 = vmatprep.subr.mxu0 0.0
      %1122 = vmatpush1.msra.mxu0 0.0
      %1123 = vmatprep.subr.mxu0 0.0
      %1124 = vmatpush1.msra.mxu0 0.0
      %1125 = vmatprep.subr.mxu0 0.0
      %1126 = vmatpush1.msra.mxu0 0.0
      %1127 = vmatprep.subr.mxu0 0.0
      %1128 = vmatpush1.msra.mxu0 0.0
      %1129 = vmatprep.subr.mxu0 0.0
      %1130 = vmatpush1.msra.mxu0 0.0
      %1131 = vmatprep.subr.mxu0 0.0
      %1132 = vmatpush1.msra.mxu0 0.0
      %1133 = vmatprep.subr.mxu0 0.0
      %1134 = vmatpush1.msra.mxu0 0.0
      %1135 = vmatprep.subr.mxu0 0.0
      %1136 = vmatpush1.msra.mxu0 0.0
      %1137 = vmatprep.mubr.f32.mxu0 0.0
      %1138 = vmatmul.mubr.f32.gmra.mrb[0].mxu0 %v1050
      %v1139 = vpop.f32.mrb[0].mxu0
      %v1140 = vadd.f32 0.0, %v1139
      %v1141 = vpop.f32.mrb[0].mxu0
      %1142 = vmatprep.mubr.f32.mxu0 0.0
      %1143 = vmatmul.mubr.f32.gmra.mrb[0].mxu0 %v1053
      %v1144 = vpop.f32.mrb[0].mxu0
      %v1145 = vadd.f32 0.0, %v1144
      %v1146 = vpop.f32.mrb[0].mxu0
      %1147 = vmatprep.mubr.f32.mxu0 0.0
      %1148 = vmatmul.mubr.f32.gmra.mrb[0].mxu0 %v1056
      %v1149 = vpop.f32.mrb[0].mxu0
      %v1150 = vadd.f32 0.0, %v1149
      %v1151 = vpop.f32.mrb[0].mxu0
      %1152 = vmatprep.mubr.f32.mxu0 0.0
      %1153 = vmatmul.mubr.f32.gmra.mrb[0].mxu0 %v1059
      %v1154 = vpop.f32.mrb[0].mxu0
      %v1155 = vadd.f32 0.0, %v1154
      %v1156 = vpop.f32.mrb[0].mxu0
      %1157 = vmatprep.mubr.f32.mxu0 0.0
      %1158 = vmatmul.mubr.f32.gmra.mrb[0].mxu0 %v1062
      %v1159 = vpop.f32.mrb[0].mxu0
      %v1160 = vadd.f32 0.0, %v1159
      %v1161 = vpop.f32.mrb[0].mxu0
      %1162 = vmatprep.mubr.f32.mxu0 0.0
      %1163 = vmatmul.mubr.f32.gmra.mrb[0].mxu0 %v1065
      %v1164 = vpop.f32.mrb[0].mxu0
      %v1165 = vadd.f32 0.0, %v1164
      %v1166 = vpop.f32.mrb[0].mxu0
      %1167 = vmatprep.mubr.f32.mxu0 0.0
      %1168 = vmatmul.mubr.f32.gmra.mrb[0].mxu0 %v1068
      %v1169 = vpop.f32.mrb[0].mxu0
      %v1170 = vadd.f32 0.0, %v1169
      %v1171 = vpop.f32.mrb[0].mxu0
      %1172 = vmatprep.mubr.f32.mxu0 0.0
      %1173 = vmatmul.mubr.f32.gmra.mrb[0].mxu0 %v1071
      %v1174 = vpop.f32.mrb[0].mxu0
      %v1175 = vadd.f32 0.0, %v1174
      %v1176 = vpop.f32.mrb[0].mxu0
      %1177 = vdwg.mxu0
      %v1178 = vadd.f32 %v1039, %v1140
      %v1179 = vadd.f32 %v1040, %v1145
      %v1180 = vadd.f32 %v1041, %v1150
      %v1181 = vadd.f32 %v1042, %v1155
      %v1182 = vadd.f32 %v1043, %v1160
      %v1183 = vadd.f32 %v1044, %v1165
      %v1184 = vadd.f32 %v1045, %v1170
      %v1185 = vadd.f32 %v1046, %v1175
      %v1186 = vld [vmem:[%s3] sm:$0x1]
      %v1188 = vlaneseq
      %v1189 = vshrl.u32 %v1188, 7
      %v1190 = vsub.s32 0, %v1189
      %v1191 = vrot.slane %v1186, %v1190
      %v1193 = vadd.f32 %v1178, %v1191
      %v1194 = vadd.f32 %v1179, %v1191
      %v1195 = vadd.f32 %v1180, %v1191
      %v1196 = vadd.f32 %v1181, %v1191
      %v1197 = vadd.f32 %v1182, %v1191
      %v1198 = vadd.f32 %v1183, %v1191
      %v1199 = vadd.f32 %v1184, %v1191
      %v1200 = vadd.f32 %v1185, %v1191
      %vm1201 = vcmask 31744
      %1202 = vst.msk [vmem:[%s316] sm:$0xff] %vm1201, %v1193
      %1203 = vst.msk [vmem:[%s316 + $0x8] sm:$0xff] %vm1201, %v1194
      %1204 = vst.msk [vmem:[%s316 + $0x10] sm:$0xff] %vm1201, %v1195
      %1205 = vst.msk [vmem:[%s316 + $0x18] sm:$0xff] %vm1201, %v1196
      %1206 = vst.msk [vmem:[%s316 + $0x20] sm:$0xff] %vm1201, %v1197
      %1207 = vst.msk [vmem:[%s316 + $0x28] sm:$0xff] %vm1201, %v1198
      %1208 = vst.msk [vmem:[%s316 + $0x30] sm:$0xff] %vm1201, %v1199
      %1209 = vst.msk [vmem:[%s316 + $0x38] sm:$0xff] %vm1201, %v1200
      %s1210 = smul.u32 8, %s20
      %p1211 = scmp.lt.s32.totalorder %s19, 1
      %s1212 = scalar_select %p1211, %s19, 1
      %p1213 = scmp.lt.s32.totalorder %s1210, 7
      %s1214 = scalar_select %p1213, %s1210, 7
      %s1215 = smul.addr %s1212, 8
      %s1216 = sadd.s32 %s1214, %s1215
      %s1217 = smul.addr %s1216, 8
      %s1218 = scalar_lea.vmem %s4, %s1217
      // Predicated region
      $region37: #{tpu_custom_call.1} parent=35 // pred_check
        %p1219 = pneg %p149
      $region38: #{tpu_custom_call.1} parent=35 // pred_check_branch
        %1221 = sbr.rel (%p1219) target = $region40
      $region39: #{tpu_custom_call.1} parent=35 // pred_region
        %s1222 = smul.u32 8, %s20
      $region40: #{tpu_custom_call.1} parent=35 // pred_fallthru
        _
    $region36: #{tpu_custom_call.1} parent=5 // pred_fallthru
      _
    %p1223 = scmp.le.s32.totalorder 2, %s10
    // Predicated region
    $region41: #{tpu_custom_call.1} parent=5 // pred_check
      %p1224 = pneg %p1223
    $region42: #{tpu_custom_call.1} parent=5 // pred_check_branch
      %1226 = sbr.rel (%p1224) target = $region44
    $region43: #{tpu_custom_call.1} parent=5 // pred_region
      %s1227 = ssub.s32 %s10, 2
      // Predicated region
      $region45: #{tpu_custom_call.1} parent=43 // pred_check
        %p1228 = pneg %p155
      $region46: #{tpu_custom_call.1} parent=43 // pred_check_branch
        %1230 = sbr.rel (%p1228) target = $region48
      $region47: #{tpu_custom_call.1} parent=43 // pred_region
        %s1231 = smul.u32 8, %s22
        %p1232 = scmp.lt.s32.totalorder %s21, 1
        %s1233 = scalar_select %p1232, %s21, 1
        %p1234 = scmp.lt.s32.totalorder %s1231, 7
        %s1235 = scalar_select %p1234, %s1231, 7
        %s1236 = smul.addr %s1233, 8
        %s1237 = sadd.s32 %s1235, %s1236
        %s1238 = smul.addr %s1237, 8
        %s1239 = scalar_lea.vmem %s4, %s1238
      $region48: #{tpu_custom_call.1} parent=43 // pred_fallthru
        _
    $region44: #{tpu_custom_call.1} parent=5 // pred_fallthru
      _
  $region6: #{tpu_custom_call.1} parent=0 // loop_footer
    %s14 = sadd.s32 1, %s10
  $region7: #{tpu_custom_call.1} parent=0 // loop_footer_branch
    %9 = sbr.rel target = $region3
  $region8: #{tpu_custom_call.1} parent=0 // loop_exit
    _

</llo_original>
